<compile_context>
chip_gen: v5e
topology: v5e:2x2
jax: 0.10.0
libtpu: 0.0.40
codegen_flags: <defaults>
</compile_context>

<pallas_src>
import functools

import jax
import jax.numpy as jnp
from jax import lax
from jax.experimental import pallas as pl
from jax.experimental.pallas import tpu as pltpu


def _cssa_kernel(x_ref, w1t_ref, w2t_ref, o_ref, *, thresh, inv_hw):
    # x_ref: (bt, C, HW) — HW is the true (unpadded) spatial extent.
    x = x_ref[...]

    # Global average pool over the spatial (lane) axis.
    avg = jnp.sum(x, axis=-1) * inv_hw                                   # (bt, C)

    # Squeeze-excite MLP, batched over the bt images of this block.
    z1 = jnp.maximum(
        jnp.dot(avg, w1t_ref[...],
                preferred_element_type=jnp.float32,
                precision=lax.Precision.HIGHEST),
        0.0)                                                             # (bt, R)
    attn = jax.nn.sigmoid(
        jnp.dot(z1, w2t_ref[...],
                preferred_element_type=jnp.float32,
                precision=lax.Precision.HIGHEST))                        # (bt, C)

    # Scale + hard threshold, written straight to the output tile.
    y = x * attn[:, :, None]
    o_ref[...] = jnp.where(y < thresh, 0.0, y).astype(o_ref.dtype)


def _largest_divisor_leq(n, cap):
    cap = max(1, min(n, cap))
    for d in range(cap, 0, -1):
        if n % d == 0:
            return d
    return 1


def _vmem_capacity_bytes():
    # 128 MiB on v5e/v6e, 64 MiB per TC on v7x; fall back conservatively.
    try:
        info = pltpu.get_tpu_info()
        return int(getattr(info, "vmem_capacity_bytes", 64 << 20))
    except Exception:
        return 64 << 20


def cssa_forward(x_nchw, w1, w2, *, cssa_thresh=0.002,
                 target_block_bytes=12 << 20):
    """x_nchw: (B, C, H, W) float32; w1: (R, C) (fc1 1x1); w2: (C, R) (fc2 1x1)."""
    B, C, H, W = x_nchw.shape
    R = w1.shape[0]
    HW = H * W

    # (B, C, H, W) -> (B, C, H*W): metadata-only reshape, no HBM traffic.
    x_flat = x_nchw.reshape(B, C, HW)

    # ---- per-generation VMEM budget -----------------------------------------
    phys_vmem = _vmem_capacity_bytes()
    vmem_limit = (phys_vmem * 3) // 4            # ~96 MiB v5e/v6e, ~48 MiB v7x
    weight_bytes = 2 * C * R * x_nchw.dtype.itemsize
    # Default pipeline double-buffers input and output: 4 block buffers live.
    block_cap = max(1 << 16, (vmem_limit - weight_bytes - (1 << 20)) // 4)
    block_bytes = min(target_block_bytes, block_cap)

    bytes_per_image = C * HW * x_flat.dtype.itemsize
    bt_cap = max(1, block_bytes // max(bytes_per_image, 1))
    # Keep >=4 grid steps when the batch allows, so both v7x TensorCores get
    # >=2 steps each and adjacent steps' DMAs overlap (near-free on v5e/v6e at
    # these block sizes).
    if B >= 4:
        bt_cap = min(bt_cap, pl.cdiv(B, 4))
    bt = _largest_divisor_leq(B, int(bt_cap))    # exact divisor: no batch padding

    # If even a single image overflows the block cap, widen the scoped limit.
    actual_block_bytes = bt * bytes_per_image
    if 4 * actual_block_bytes + weight_bytes + (1 << 20) > vmem_limit:
        vmem_limit = min(phys_vmem - (8 << 20),
                         4 * actual_block_bytes + weight_bytes + (2 << 20))
    # TODO(synk): for activations where one image (C*H*W*4 bytes) cannot fit the
    # VMEM budget (earlier on v7x's 64 MiB), switch to a two-phase HW-tiled
    # variant (phase 1: per-channel partial sums; phase 2: tiled scale+threshold).

    # Pre-transpose weights so the in-kernel MLP is (bt,C)@(C,R) and (bt,R)@(R,C).
    w1t = jnp.transpose(w1)                      # (C, R)
    w2t = jnp.transpose(w2)                      # (R, C)

    kernel = functools.partial(_cssa_kernel, thresh=cssa_thresh, inv_hw=1.0 / HW)

    out_flat = pl.pallas_call(
        kernel,
        out_shape=jax.ShapeDtypeStruct((B, C, HW), x_nchw.dtype),
        grid_spec=pltpu.PrefetchScalarGridSpec(
            num_scalar_prefetch=0,
            grid=(B // bt,),
            in_specs=[
                pl.BlockSpec((bt, C, HW), lambda b: (b, 0, 0)),
                pl.BlockSpec((C, R), lambda b: (0, 0)),   # resident across steps
                pl.BlockSpec((R, C), lambda b: (0, 0)),   # resident across steps
            ],
            out_specs=pl.BlockSpec((bt, C, HW), lambda b: (b, 0, 0)),
        ),
        compiler_params=pltpu.CompilerParams(
            dimension_semantics=("parallel",),
            vmem_limit_bytes=int(vmem_limit),
        ),
    )(x_flat, w1t, w2t)

    return out_flat.reshape(B, C, H, W)


def _reference(x, w1, w2, thresh):
    # Pure-JAX reference mirroring the PyTorch module; also returns pre-threshold y.
    avg = jnp.mean(x, axis=(2, 3), keepdims=True)                        # (B,C,1,1)
    z1 = jnp.maximum(
        jnp.einsum("rc,bcij->brij", w1, avg,
                   precision=lax.Precision.HIGHEST), 0.0)                # (B,R,1,1)
    a = jax.nn.sigmoid(
        jnp.einsum("cr,brij->bcij", w2, z1,
                   precision=lax.Precision.HIGHEST))                     # (B,C,1,1)
    y = x * a
    return jnp.where(y < thresh, 0.0, y), y


if __name__ == "__main__":
    key = jax.random.PRNGKey(0)
    B, C, H, W = 2, 16, 16, 16
    reduction_factor = 4
    R = C // reduction_factor
    cssa_thresh = 0.002

    kx, k1, k2 = jax.random.split(key, 3)
    x = jax.random.normal(kx, (B, C, H, W), dtype=jnp.float32)
    # Synthetic weights (fc1: C->R, fc2: R->C, 1x1 convs, no bias).
    w1 = jax.random.normal(k1, (R, C), dtype=jnp.float32) * 0.1
    w2 = jax.random.normal(k2, (C, R), dtype=jnp.float32) * 0.1

    out = cssa_forward(x, w1, w2, cssa_thresh=cssa_thresh)
    out = jax.block_until_ready(out)

    ref, pre = _reference(x, w1, w2, cssa_thresh)
    assert out.shape == ref.shape, "shape mismatch vs reference"
    # Exclude elements sitting exactly on the hard-threshold boundary; the
    # select there is legitimately sensitive to last-ulp matmul differences.
    safe = jnp.abs(pre - cssa_thresh) > 1e-4
    assert jnp.allclose(jnp.where(safe, out, 0.0),
                        jnp.where(safe, ref, 0.0),
                        atol=1e-5, rtol=1e-5), "mismatch vs reference"

    print("KERNEL_OK")
</pallas_src>

<mosaic_0001>
module attributes {stable_mosaic.version = 11 : i64} {
  func.func @_cssa_kernel(%arg0: i32, %arg1: memref<2x16x256xf32, #tpu.memory_space<vmem>>, %arg2: memref<16x4xf32, #tpu.memory_space<vmem>>, %arg3: memref<4x16xf32, #tpu.memory_space<vmem>>, %arg4: memref<2x16x256xf32, #tpu.memory_space<vmem>>) attributes {dimension_semantics = [#tpu.dimension_semantics<parallel>], iteration_bounds = array<i64: 1>, scalar_prefetch = 0 : i64, scratch_operands = 0 : i64, tpu.core_type = #tpu.core_type<tc>, window_params = [{transform_indices = @transform_0, window_bounds = array<i64: 2, 16, 256>}, {pipeline_mode = #tpu.pipeline_mode<synchronous>, transform_indices = @transform_1, window_bounds = array<i64: 16, 4>}, {pipeline_mode = #tpu.pipeline_mode<synchronous>, transform_indices = @transform_2, window_bounds = array<i64: 4, 16>}, {transform_indices = @transform_3, window_bounds = array<i64: 2, 16, 256>}]} {
    %c0 = arith.constant 0 : index
    %c0_0 = arith.constant 0 : index
    %c0_1 = arith.constant 0 : index
    %0 = vector.load %arg1[%c0, %c0_0, %c0_1] : memref<2x16x256xf32, #tpu.memory_space<vmem>>, vector<2x16x256xf32>
    %cst = arith.constant dense<0.000000e+00> : vector<2x16xf32>
    %1 = vector.multi_reduction <add>, %0, %cst [2] : vector<2x16x256xf32> to vector<2x16xf32>
    %cst_2 = arith.constant 3.906250e-03 : f32
    %2 = vector.broadcast %cst_2 : f32 to vector<2x16xf32>
    %3 = arith.mulf %1, %2 : vector<2x16xf32>
    %c0_3 = arith.constant 0 : index
    %c0_4 = arith.constant 0 : index
    %4 = vector.load %arg2[%c0_3, %c0_4] : memref<16x4xf32, #tpu.memory_space<vmem>>, vector<16x4xf32>
    %cst_5 = arith.constant dense<0.000000e+00> : vector<2x4xf32>
    %5 = tpu.matmul %3, %4, %cst_5 {dimension_numbers = #tpu.dot_dimension_numbers<[1], [0], [0], [1], [0, 0, 1, 1], [], []>, precision = #tpu.contract_precision<fp32>} : vector<2x16xf32>, vector<16x4xf32>, vector<2x4xf32> -> vector<2x4xf32>
    %cst_6 = arith.constant 0.000000e+00 : f32
    %6 = vector.broadcast %cst_6 : f32 to vector<2x4xf32>
    %7 = arith.maximumf %5, %6 : vector<2x4xf32>
    %c0_7 = arith.constant 0 : index
    %c0_8 = arith.constant 0 : index
    %8 = vector.load %arg3[%c0_7, %c0_8] : memref<4x16xf32, #tpu.memory_space<vmem>>, vector<4x16xf32>
    %cst_9 = arith.constant dense<0.000000e+00> : vector<2x16xf32>
    %9 = tpu.matmul %7, %8, %cst_9 {dimension_numbers = #tpu.dot_dimension_numbers<[1], [0], [0], [1], [0, 0, 1, 1], [], []>, precision = #tpu.contract_precision<fp32>} : vector<2x4xf32>, vector<4x16xf32>, vector<2x16xf32> -> vector<2x16xf32>
    %10 = arith.negf %9 : vector<2x16xf32>
    %11 = math.exp %10 : vector<2x16xf32>
    %cst_10 = arith.constant 1.000000e+00 : f32
    %12 = vector.broadcast %cst_10 : f32 to vector<2x16xf32>
    %13 = arith.addf %12, %11 : vector<2x16xf32>
    %14 = arith.divf %12, %13 : vector<2x16xf32>
    %15 = vector.shape_cast %14 : vector<2x16xf32> to vector<2x16x1xf32>
    %16 = vector.broadcast %15 : vector<2x16x1xf32> to vector<2x16x256xf32>
    %17 = arith.mulf %0, %16 : vector<2x16x256xf32>
    %cst_11 = arith.constant 2.000000e-03 : f32
    %18 = vector.broadcast %cst_11 : f32 to vector<2x16x256xf32>
    %19 = arith.cmpf olt, %17, %18 : vector<2x16x256xf32>
    %cst_12 = arith.constant 0.000000e+00 : f32
    %20 = vector.broadcast %cst_12 : f32 to vector<2x16x256xf32>
    %21 = arith.select %19, %20, %17 : vector<2x16x256xi1>, vector<2x16x256xf32>
    %c0_13 = arith.constant 0 : index
    %c0_14 = arith.constant 0 : index
    %c0_15 = arith.constant 0 : index
    %22 = vector.load %arg4[%c0_13, %c0_14, %c0_15] : memref<2x16x256xf32, #tpu.memory_space<vmem>>, vector<2x16x256xf32>
    tpu.vector_store %arg4[%c0_13, %c0_14, %c0_15], %21 {strides = array<i32>} : memref<2x16x256xf32, #tpu.memory_space<vmem>>, vector<2x16x256xf32>,
    return
  }
  func.func @transform_0(%arg0: i32) -> (i32, i32, i32) {
    %c0_i32 = arith.constant 0 : i32
    %c0_i32_0 = arith.constant 0 : i32
    %c0_i32_1 = arith.constant 0 : i32
    return %arg0, %c0_i32, %c0_i32_0 : i32, i32, i32
  }
  func.func @transform_1(%arg0: i32) -> (i32, i32) {
    %c0_i32 = arith.constant 0 : i32
    %c0_i32_0 = arith.constant 0 : i32
    %c0_i32_1 = arith.constant 0 : i32
    return %c0_i32, %c0_i32_0 : i32, i32
  }
  func.func @transform_2(%arg0: i32) -> (i32, i32) {
    %c0_i32 = arith.constant 0 : i32
    %c0_i32_0 = arith.constant 0 : i32
    %c0_i32_1 = arith.constant 0 : i32
    return %c0_i32, %c0_i32_0 : i32, i32
  }
  func.func @transform_3(%arg0: i32) -> (i32, i32, i32) {
    %c0_i32 = arith.constant 0 : i32
    %c0_i32_0 = arith.constant 0 : i32
    %c0_i32_1 = arith.constant 0 : i32
    return %arg0, %c0_i32, %c0_i32_0 : i32, i32, i32
  }
}

</mosaic_0001>

<llo_original>
// kernel: tpu_custom_call.1
$region0: #{tpu_custom_call.1}
  #allocation0 [shape = 'u32[]', space=smem, size = 0x4, offset = 0x4, fixed_abs, tag = 'smem constant byte address 0x4 - core index']
  #allocation1 [shape = 'u32[72,128]{1,0:T(1,128)}', space=vmem, size = 0x9000, scoped, tag = 'internal scratch']
  %s0 = inlined_call_operand.hbm [shape: f32[2,16,256], index: 0, kind: input, shape index: {}]
  %s1 = inlined_call_operand.vmem [shape: f32[16,4], index: 1, kind: input, shape index: {}]
  %s2 = inlined_call_operand.vmem [shape: f32[4,16], index: 2, kind: input, shape index: {}]
  %s3 = inlined_call_operand.hbm [shape: f32[2,16,256], index: 3, kind: output, shape index: {}]
  %s4 = sld [smem:[#allocation0]]
  $region26: #{tpu_custom_call.1} parent=0
    _
  %s6 = ssub.s32 1, %s4
  %s7 = scalar_select 0, %s6, %s4
  $region1: #{tpu_custom_call.1} parent=0
    #allocation2 [shape = 'u8[32768]{0}', space=vmem, size = 0x8000, scoped, tag = 'input window, operand 0, single buffered']
    #allocation3 [shape = 's32[1]{0}', space=sflag, size = 0x4, scoped, tag = 'scoped memory for tpu_custom_call.1']
    #allocation4 [shape = 's32[1]{0}', space=sflag, size = 0x4, scoped, tag = 'scoped memory for tpu_custom_call.1']
    #allocation5 [shape = 'u8[32768]{0}', space=vmem, size = 0x8000, scoped, tag = 'output window, operand 0, single buffered']
    %8 = vsyncpa [#allocation3], 0
    %9 = vsyncpa [#allocation4], 0
    // Predicated region
    $region2: #{tpu_custom_call.1} parent=1 // pred_check
      _
    $region3: #{tpu_custom_call.1} parent=1 // pred_check_branch
      %11 = sbr.rel (0) target = $region5
    $region4: #{tpu_custom_call.1} parent=1 // pred_region
      %13 = vsyncadd [#allocation3], 0
      %s14 = sshll.u32 %s0, 4
      %s15 = int_to_ptr.hbm [resolvable:$true] %s14
      %s16 = sshll.u32 [#allocation2], 4
      %s17 = int_to_ptr.vmem [resolvable:$true] %s16
      %22 = dma.hbm_to_vmem [thread:$0]  %s15, 1024, %s17, [#allocation3], 256, 256, 16
    $region5: #{tpu_custom_call.1} parent=1 // pred_fallthru
      _
    // Predicated region
    $region6: #{tpu_custom_call.1} parent=1 // pred_check
      _
    $region7: #{tpu_custom_call.1} parent=1 // pred_check_branch
      %24 = sbr.rel (0) target = $region9
    $region8: #{tpu_custom_call.1} parent=1 // pred_region
      _
    $region9: #{tpu_custom_call.1} parent=1 // pred_fallthru
      _
    // Predicated region
    $region10: #{tpu_custom_call.1} parent=1 // pred_check
      _
    $region11: #{tpu_custom_call.1} parent=1 // pred_check_branch
      %26 = sbr.rel (0) target = $region13
    $region12: #{tpu_custom_call.1} parent=1 // pred_region
      _
    $region13: #{tpu_custom_call.1} parent=1 // pred_fallthru
      _
    // Predicated region
    $region14: #{tpu_custom_call.1} parent=1 // pred_check
      _
    $region15: #{tpu_custom_call.1} parent=1 // pred_check_branch
      %28 = sbr.rel (0) target = $region17
    $region16: #{tpu_custom_call.1} parent=1 // pred_region
      %30 = dma.done [#allocation3], 1024
    $region17: #{tpu_custom_call.1} parent=1 // pred_fallthru
      _
    %v31 = vld [vmem:[#allocation2] sm:$0xff]
    %v32 = vld [vmem:[#allocation2 + $0x8] sm:$0xff]
    %v33 = vld [vmem:[#allocation2 + $0x10] sm:$0xff]
    %v34 = vld [vmem:[#allocation2 + $0x18] sm:$0xff]
    %v35 = vld [vmem:[#allocation2 + $0x20] sm:$0xff]
    %v36 = vld [vmem:[#allocation2 + $0x28] sm:$0xff]
    %v37 = vld [vmem:[#allocation2 + $0x30] sm:$0xff]
    %v38 = vld [vmem:[#allocation2 + $0x38] sm:$0xff]
    %v39 = vadd.f32 %v31, %v32
    %40 = vadd.xlane.f32.xlu0 %v39
    %v41 = vpop.xlane.xlu0 %40
    %v42 = vadd.f32 %v33, %v34
    %43 = vadd.xlane.f32.xlu0 %v42
    %v44 = vpop.xlane.xlu0 %43
    %v45 = vadd.f32 %v35, %v36
    %46 = vadd.xlane.f32.xlu0 %v45
    %v47 = vpop.xlane.xlu0 %46
    %v48 = vadd.f32 %v37, %v38
    %49 = vadd.xlane.f32.xlu0 %v48
    %v50 = vpop.xlane.xlu0 %49
    %v51 = vmul.f32 %v41, 0.00390625
    %v52 = vmul.f32 %v44, 0.00390625
    %v53 = vmul.f32 %v47, 0.00390625
    %v54 = vmul.f32 %v50, 0.00390625
    %v55 = vld [vmem:[%s1] sm:$0xff]
    %v56 = vld [vmem:[%s1 + $0x8] sm:$0xff]
    %v61 = vlaneseq
    %v62 = vand.u32 %v61, 127
    %v63 = vperm.slane %v51, %v62
    %v64 = vadd.s32 %v62, 4294967288
    %v65 = vperm.slane %v52, %v64
    %vm66 = vcmask 130112
    %v67 = vsel %vm66, %v65, %v63
    %v68 = vperm.slane %v53, %v62
    %v69 = vperm.slane %v54, %v64
    %v70 = vsel %vm66, %v69, %v68
    %vm71 = vcmask 1041409
    %v72 = vsel %vm71, %v70, %v67
    %vm73 = vcmask 130048
    %v74 = vsel %vm73, %v72, 0
    %76 = vmatpush.msra.mxu0 0.0
    %77 = vmatpush.msra.mxu0 0.0
    %78 = vmatpush.msra.mxu0 0.0
    %79 = vmatpush.msra.mxu0 0.0
    %80 = vmatpush.msra.mxu0 0.0
    %81 = vmatpush.msra.mxu0 0.0
    %82 = vmatpush.msra.mxu0 0.0
    %83 = vmatpush.msra.mxu0 0.0
    %84 = vmatpush.msra.mxu0 0.0
    %85 = vmatpush.msra.mxu0 0.0
    %86 = vmatpush.msra.mxu0 0.0
    %87 = vmatpush.msra.mxu0 0.0
    %88 = vmatpush.msra.mxu0 0.0
    %89 = vmatpush.msra.mxu0 0.0
    %v90 = vand.u32 %v56, 4294901760
    %91 = vmatpush.msra.mxu0 %v90
    %v92 = vand.u32 %v55, 4294901760
    %93 = vmatpush.msra.mxu0 %v92
    %v94 = vand.u32 %v74, 4294901760
    %v95 = vsub.f32 %v74, %v94
    %v96 = vand.u32 %v95, 4294901760
    %v97 = vsub.f32 %v95, %v96
    %v98 = vand.u32 %v97, 4294901760
    %99 = vmatmul.f32.gmra.mxu0 %v98
    %v100 = vpop.f32.mrf.mxu0
    %v101 = vadd.f32 0.0, %v100
    %102 = vdwg.mxu0
    %103 = vmatpush.msra.mxu0 0.0
    %104 = vmatpush.msra.mxu0 0.0
    %105 = vmatpush.msra.mxu0 0.0
    %106 = vmatpush.msra.mxu0 0.0
    %107 = vmatpush.msra.mxu0 0.0
    %108 = vmatpush.msra.mxu0 0.0
    %109 = vmatpush.msra.mxu0 0.0
    %110 = vmatpush.msra.mxu0 0.0
    %111 = vmatpush.msra.mxu0 0.0
    %112 = vmatpush.msra.mxu0 0.0
    %113 = vmatpush.msra.mxu0 0.0
    %114 = vmatpush.msra.mxu0 0.0
    %115 = vmatpush.msra.mxu0 0.0
    %116 = vmatpush.msra.mxu0 0.0
    %v117 = vand.u32 %v56, 4294901760
    %v118 = vsub.f32 %v56, %v117
    %v119 = vand.u32 %v118, 4294901760
    %v120 = vsub.f32 %v118, %v119
    %v121 = vand.u32 %v120, 4294901760
    %122 = vmatpush.msra.mxu0 %v121
    %v123 = vand.u32 %v55, 4294901760
    %v124 = vsub.f32 %v55, %v123
    %v125 = vand.u32 %v124, 4294901760
    %v126 = vsub.f32 %v124, %v125
    %v127 = vand.u32 %v126, 4294901760
    %128 = vmatpush.msra.mxu0 %v127
    %v129 = vand.u32 %v74, 4294901760
    %130 = vmatmul.f32.gmra.mxu0 %v129
    %v131 = vpop.f32.mrf.mxu0
    %v132 = vadd.f32 %v101, %v131
    %133 = vdwg.mxu0
    %134 = vmatpush.msra.mxu0 0.0
    %135 = vmatpush.msra.mxu0 0.0
    %136 = vmatpush.msra.mxu0 0.0
    %137 = vmatpush.msra.mxu0 0.0
    %138 = vmatpush.msra.mxu0 0.0
    %139 = vmatpush.msra.mxu0 0.0
    %140 = vmatpush.msra.mxu0 0.0
    %141 = vmatpush.msra.mxu0 0.0
    %142 = vmatpush.msra.mxu0 0.0
    %143 = vmatpush.msra.mxu0 0.0
    %144 = vmatpush.msra.mxu0 0.0
    %145 = vmatpush.msra.mxu0 0.0
    %146 = vmatpush.msra.mxu0 0.0
    %147 = vmatpush.msra.mxu0 0.0
    %v148 = vand.u32 %v56, 4294901760
    %v149 = vsub.f32 %v56, %v148
    %150 = vmatpush.msra.mxu0 %v149
    %v151 = vand.u32 %v55, 4294901760
    %v152 = vsub.f32 %v55, %v151
    %153 = vmatpush.msra.mxu0 %v152
    %v154 = vand.u32 %v74, 4294901760
    %v155 = vsub.f32 %v74, %v154
    %156 = vmatmul.f32.gmra.mxu0 %v155
    %v157 = vpop.f32.mrf.mxu0
    %v158 = vadd.f32 %v132, %v157
    %159 = vdwg.mxu0
    %160 = vmatpush.msra.mxu0 0.0
    %161 = vmatpush.msra.mxu0 0.0
    %162 = vmatpush.msra.mxu0 0.0
    %163 = vmatpush.msra.mxu0 0.0
    %164 = vmatpush.msra.mxu0 0.0
    %165 = vmatpush.msra.mxu0 0.0
    %166 = vmatpush.msra.mxu0 0.0
    %167 = vmatpush.msra.mxu0 0.0
    %168 = vmatpush.msra.mxu0 0.0
    %169 = vmatpush.msra.mxu0 0.0
    %170 = vmatpush.msra.mxu0 0.0
    %171 = vmatpush.msra.mxu0 0.0
    %172 = vmatpush.msra.mxu0 0.0
    %173 = vmatpush.msra.mxu0 0.0
    %v174 = vand.u32 %v56, 4294901760
    %175 = vmatpush.msra.mxu0 %v174
    %v176 = vand.u32 %v55, 4294901760
    %177 = vmatpush.msra.mxu0 %v176
    %v178 = vand.u32 %v74, 4294901760
    %v179 = vsub.f32 %v74, %v178
    %v180 = vand.u32 %v179, 4294901760
    %181 = vmatmul.f32.gmra.mxu0 %v180
    %v182 = vpop.f32.mrf.mxu0
    %v183 = vadd.f32 %v158, %v182
    %184 = vdwg.mxu0
    %185 = vmatpush.msra.mxu0 0.0
    %186 = vmatpush.msra.mxu0 0.0
    %187 = vmatpush.msra.mxu0 0.0
    %188 = vmatpush.msra.mxu0 0.0
    %189 = vmatpush.msra.mxu0 0.0
    %190 = vmatpush.msra.mxu0 0.0
    %191 = vmatpush.msra.mxu0 0.0
    %192 = vmatpush.msra.mxu0 0.0
    %193 = vmatpush.msra.mxu0 0.0
    %194 = vmatpush.msra.mxu0 0.0
    %195 = vmatpush.msra.mxu0 0.0
    %196 = vmatpush.msra.mxu0 0.0
    %197 = vmatpush.msra.mxu0 0.0
    %198 = vmatpush.msra.mxu0 0.0
    %v199 = vand.u32 %v56, 4294901760
    %v200 = vsub.f32 %v56, %v199
    %v201 = vand.u32 %v200, 4294901760
    %202 = vmatpush.msra.mxu0 %v201
    %v203 = vand.u32 %v55, 4294901760
    %v204 = vsub.f32 %v55, %v203
    %v205 = vand.u32 %v204, 4294901760
    %206 = vmatpush.msra.mxu0 %v205
    %v207 = vand.u32 %v74, 4294901760
    %208 = vmatmul.f32.gmra.mxu0 %v207
    %v209 = vpop.f32.mrf.mxu0
    %v210 = vadd.f32 %v183, %v209
    %211 = vdwg.mxu0
    %212 = vmatpush.msra.mxu0 0.0
    %213 = vmatpush.msra.mxu0 0.0
    %214 = vmatpush.msra.mxu0 0.0
    %215 = vmatpush.msra.mxu0 0.0
    %216 = vmatpush.msra.mxu0 0.0
    %217 = vmatpush.msra.mxu0 0.0
    %218 = vmatpush.msra.mxu0 0.0
    %219 = vmatpush.msra.mxu0 0.0
    %220 = vmatpush.msra.mxu0 0.0
    %221 = vmatpush.msra.mxu0 0.0
    %222 = vmatpush.msra.mxu0 0.0
    %223 = vmatpush.msra.mxu0 0.0
    %224 = vmatpush.msra.mxu0 0.0
    %225 = vmatpush.msra.mxu0 0.0
    %v226 = vand.u32 %v56, 4294901760
    %227 = vmatpush.msra.mxu0 %v226
    %v228 = vand.u32 %v55, 4294901760
    %229 = vmatpush.msra.mxu0 %v228
    %v230 = vand.u32 %v74, 4294901760
    %231 = vmatmul.f32.gmra.mxu0 %v230
    %v232 = vpop.f32.mrf.mxu0
    %v233 = vadd.f32 %v210, %v232
    %234 = vdwg.mxu0
    %v235 = vmax.f32 %v233, 0.0
    %v236 = vld [vmem:[%s2] sm:$0xf]
    %vm237 = vcmask 31744
    %v239 = vsel %vm237, %v235, 0
    %vm241 = vcmask 1043456
    %v243 = vsel %vm241, %v236, 0
    %245 = vmatpush.msra.mxu0 0.0
    %246 = vmatpush.msra.mxu0 0.0
    %247 = vmatpush.msra.mxu0 0.0
    %248 = vmatpush.msra.mxu0 0.0
    %249 = vmatpush.msra.mxu0 0.0
    %250 = vmatpush.msra.mxu0 0.0
    %251 = vmatpush.msra.mxu0 0.0
    %252 = vmatpush.msra.mxu0 0.0
    %253 = vmatpush.msra.mxu0 0.0
    %254 = vmatpush.msra.mxu0 0.0
    %255 = vmatpush.msra.mxu0 0.0
    %256 = vmatpush.msra.mxu0 0.0
    %257 = vmatpush.msra.mxu0 0.0
    %258 = vmatpush.msra.mxu0 0.0
    %259 = vmatpush.msra.mxu0 0.0
    %v260 = vand.u32 %v243, 4294901760
    %261 = vmatpush.msra.mxu0 %v260
    %v262 = vand.u32 %v239, 4294901760
    %v263 = vsub.f32 %v239, %v262
    %v264 = vand.u32 %v263, 4294901760
    %v265 = vsub.f32 %v263, %v264
    %v266 = vand.u32 %v265, 4294901760
    %267 = vmatmul.f32.gmra.mxu0 %v266
    %v268 = vpop.f32.mrf.mxu0
    %v269 = vadd.f32 0.0, %v268
    %270 = vdwg.mxu0
    %271 = vmatpush.msra.mxu0 0.0
    %272 = vmatpush.msra.mxu0 0.0
    %273 = vmatpush.msra.mxu0 0.0
    %274 = vmatpush.msra.mxu0 0.0
    %275 = vmatpush.msra.mxu0 0.0
    %276 = vmatpush.msra.mxu0 0.0
    %277 = vmatpush.msra.mxu0 0.0
    %278 = vmatpush.msra.mxu0 0.0
    %279 = vmatpush.msra.mxu0 0.0
    %280 = vmatpush.msra.mxu0 0.0
    %281 = vmatpush.msra.mxu0 0.0
    %282 = vmatpush.msra.mxu0 0.0
    %283 = vmatpush.msra.mxu0 0.0
    %284 = vmatpush.msra.mxu0 0.0
    %285 = vmatpush.msra.mxu0 0.0
    %v286 = vand.u32 %v243, 4294901760
    %v287 = vsub.f32 %v243, %v286
    %v288 = vand.u32 %v287, 4294901760
    %v289 = vsub.f32 %v287, %v288
    %v290 = vand.u32 %v289, 4294901760
    %291 = vmatpush.msra.mxu0 %v290
    %v292 = vand.u32 %v239, 4294901760
    %293 = vmatmul.f32.gmra.mxu0 %v292
    %v294 = vpop.f32.mrf.mxu0
    %v295 = vadd.f32 %v269, %v294
    %296 = vdwg.mxu0
    %297 = vmatpush.msra.mxu0 0.0
    %298 = vmatpush.msra.mxu0 0.0
    %299 = vmatpush.msra.mxu0 0.0
    %300 = vmatpush.msra.mxu0 0.0
    %301 = vmatpush.msra.mxu0 0.0
    %302 = vmatpush.msra.mxu0 0.0
    %303 = vmatpush.msra.mxu0 0.0
    %304 = vmatpush.msra.mxu0 0.0
    %305 = vmatpush.msra.mxu0 0.0
    %306 = vmatpush.msra.mxu0 0.0
    %307 = vmatpush.msra.mxu0 0.0
    %308 = vmatpush.msra.mxu0 0.0
    %309 = vmatpush.msra.mxu0 0.0
    %310 = vmatpush.msra.mxu0 0.0
    %311 = vmatpush.msra.mxu0 0.0
    %v312 = vand.u32 %v243, 4294901760
    %v313 = vsub.f32 %v243, %v312
    %314 = vmatpush.msra.mxu0 %v313
    %v315 = vand.u32 %v239, 4294901760
    %v316 = vsub.f32 %v239, %v315
    %317 = vmatmul.f32.gmra.mxu0 %v316
    %v318 = vpop.f32.mrf.mxu0
    %v319 = vadd.f32 %v295, %v318
    %320 = vdwg.mxu0
    %321 = vmatpush.msra.mxu0 0.0
    %322 = vmatpush.msra.mxu0 0.0
    %323 = vmatpush.msra.mxu0 0.0
    %324 = vmatpush.msra.mxu0 0.0
    %325 = vmatpush.msra.mxu0 0.0
    %326 = vmatpush.msra.mxu0 0.0
    %327 = vmatpush.msra.mxu0 0.0
    %328 = vmatpush.msra.mxu0 0.0
    %329 = vmatpush.msra.mxu0 0.0
    %330 = vmatpush.msra.mxu0 0.0
    %331 = vmatpush.msra.mxu0 0.0
    %332 = vmatpush.msra.mxu0 0.0
    %333 = vmatpush.msra.mxu0 0.0
    %334 = vmatpush.msra.mxu0 0.0
    %335 = vmatpush.msra.mxu0 0.0
    %v336 = vand.u32 %v243, 4294901760
    %337 = vmatpush.msra.mxu0 %v336
    %v338 = vand.u32 %v239, 4294901760
    %v339 = vsub.f32 %v239, %v338
    %v340 = vand.u32 %v339, 4294901760
    %341 = vmatmul.f32.gmra.mxu0 %v340
    %v342 = vpop.f32.mrf.mxu0
    %v343 = vadd.f32 %v319, %v342
    %344 = vdwg.mxu0
    %345 = vmatpush.msra.mxu0 0.0
    %346 = vmatpush.msra.mxu0 0.0
    %347 = vmatpush.msra.mxu0 0.0
    %348 = vmatpush.msra.mxu0 0.0
    %349 = vmatpush.msra.mxu0 0.0
    %350 = vmatpush.msra.mxu0 0.0
    %351 = vmatpush.msra.mxu0 0.0
    %352 = vmatpush.msra.mxu0 0.0
    %353 = vmatpush.msra.mxu0 0.0
    %354 = vmatpush.msra.mxu0 0.0
    %355 = vmatpush.msra.mxu0 0.0
    %356 = vmatpush.msra.mxu0 0.0
    %357 = vmatpush.msra.mxu0 0.0
    %358 = vmatpush.msra.mxu0 0.0
    %359 = vmatpush.msra.mxu0 0.0
    %v360 = vand.u32 %v243, 4294901760
    %v361 = vsub.f32 %v243, %v360
    %v362 = vand.u32 %v361, 4294901760
    %363 = vmatpush.msra.mxu0 %v362
    %v364 = vand.u32 %v239, 4294901760
    %365 = vmatmul.f32.gmra.mxu0 %v364
    %v366 = vpop.f32.mrf.mxu0
    %v367 = vadd.f32 %v343, %v366
    %368 = vdwg.mxu0
    %369 = vmatpush.msra.mxu0 0.0
    %370 = vmatpush.msra.mxu0 0.0
    %371 = vmatpush.msra.mxu0 0.0
    %372 = vmatpush.msra.mxu0 0.0
    %373 = vmatpush.msra.mxu0 0.0
    %374 = vmatpush.msra.mxu0 0.0
    %375 = vmatpush.msra.mxu0 0.0
    %376 = vmatpush.msra.mxu0 0.0
    %377 = vmatpush.msra.mxu0 0.0
    %378 = vmatpush.msra.mxu0 0.0
    %379 = vmatpush.msra.mxu0 0.0
    %380 = vmatpush.msra.mxu0 0.0
    %381 = vmatpush.msra.mxu0 0.0
    %382 = vmatpush.msra.mxu0 0.0
    %383 = vmatpush.msra.mxu0 0.0
    %v384 = vand.u32 %v243, 4294901760
    %385 = vmatpush.msra.mxu0 %v384
    %v386 = vand.u32 %v239, 4294901760
    %387 = vmatmul.f32.gmra.mxu0 %v386
    %v388 = vpop.f32.mrf.mxu0
    %v389 = vadd.f32 %v367, %v388
    %390 = vdwg.mxu0
    %v391 = vxor.u32 %v389, 2147483648
    %v392 = vmul.f32 %v391, 1.442695
    %v393 = vpow.pop %v392
    %v394 = vadd.f32 %v393, 1.0
    %v395 = vrcp.pop %v394
    %v396 = vmul.f32 %v394, %v395
    %v397 = vsub.f32 1.0, %v396
    %v398 = vmul.f32 %v395, %v397
    %v399 = vadd.f32 %v395, %v398
    %vm400 = vweird.f32 %v394
    %vm401 = vweird.f32 %v395
    %vm402 = vmor %vm400, %vm401
    %v403 = vsel %vm402, %v395, %v399
    %v404 = vand.u32 2147483647, %v394
    %vm405 = vcmp.eq.f32.partialorder %v404, 8.507059e+37
    %v406 = vand.u32 %v394, 2147483648
    %v407 = vor.u32 1.1754944e-38, %v406
    %v408 = vsel %vm405, %v407, %v403
    %v409 = vmul.f32 1.0, %v408
    %v410 = vperm.slane %v409, 0
    %v411 = vlaneseq
    %v412 = vshrl.u32 %v411, 7
    %414 = vset.pattern.permute.xlu0 %v412
    %415 = vperm.xlu0 %414, %v410
    %v416 = vpop.permute.xlu0 %415
    %v417 = vlaneseq
    %v418 = vshrl.u32 %v417, 7
    %v419 = vadd.s32 %v418, 8
    %420 = vset.pattern.permute.xlu0 %v419
    %421 = vperm.xlu0 %420, %v410
    %v422 = vpop.permute.xlu0 %421
    %v423 = vperm.slane %v409, 1
    %v424 = vlaneseq
    %v425 = vshrl.u32 %v424, 7
    %427 = vset.pattern.permute.xlu0 %v425
    %428 = vperm.xlu0 %427, %v423
    %v429 = vpop.permute.xlu0 %428
    %v430 = vlaneseq
    %v431 = vshrl.u32 %v430, 7
    %v432 = vadd.s32 %v431, 8
    %433 = vset.pattern.permute.xlu0 %v432
    %434 = vperm.xlu0 %433, %v423
    %v435 = vpop.permute.xlu0 %434
    %v436 = vmul.f32 %v31, %v416
    %v437 = vmul.f32 %v32, %v416
    %v438 = vmul.f32 %v33, %v422
    %v439 = vmul.f32 %v34, %v422
    %v440 = vmul.f32 %v35, %v429
    %v441 = vmul.f32 %v36, %v429
    %v442 = vmul.f32 %v37, %v435
    %v443 = vmul.f32 %v38, %v435
    %vm444 = vcmp.lt.f32.partialorder %v436, 0.002
    %vm445 = vcmp.lt.f32.partialorder %v437, 0.002
    %vm446 = vcmp.lt.f32.partialorder %v438, 0.002
    %vm447 = vcmp.lt.f32.partialorder %v439, 0.002
    %vm448 = vcmp.lt.f32.partialorder %v440, 0.002
    %vm449 = vcmp.lt.f32.partialorder %v441, 0.002
    %vm450 = vcmp.lt.f32.partialorder %v442, 0.002
    %vm451 = vcmp.lt.f32.partialorder %v443, 0.002
    %v452 = vsel %vm444, 0.0, %v436
    %v453 = vsel %vm445, 0.0, %v437
    %v454 = vsel %vm446, 0.0, %v438
    %v455 = vsel %vm447, 0.0, %v439
    %v456 = vsel %vm448, 0.0, %v440
    %v457 = vsel %vm449, 0.0, %v441
    %v458 = vsel %vm450, 0.0, %v442
    %v459 = vsel %vm451, 0.0, %v443
    %460 = vst [vmem:[#allocation5] sm:$0xff] %v452
    %461 = vst [vmem:[#allocation5 + $0x8] sm:$0xff] %v453
    %462 = vst [vmem:[#allocation5 + $0x10] sm:$0xff] %v454
    %463 = vst [vmem:[#allocation5 + $0x18] sm:$0xff] %v455
    %464 = vst [vmem:[#allocation5 + $0x20] sm:$0xff] %v456
    %465 = vst [vmem:[#allocation5 + $0x28] sm:$0xff] %v457
    %466 = vst [vmem:[#allocation5 + $0x30] sm:$0xff] %v458
    %467 = vst [vmem:[#allocation5 + $0x38] sm:$0xff] %v459
    // Predicated region
    $region18: #{tpu_custom_call.1} parent=1 // pred_check
      _
    $region19: #{tpu_custom_call.1} parent=1 // pred_check_branch
      %469 = sbr.rel (0) target = $region21
    $region20: #{tpu_custom_call.1} parent=1 // pred_region
      %471 = vsyncadd [#allocation4], 0
      %s472 = sshll.u32 [#allocation5], 4
      %s473 = int_to_ptr.vmem [resolvable:$true] %s472
      %s474 = sshll.u32 %s3, 4
      %s475 = int_to_ptr.hbm [resolvable:$true] %s474
      %480 = dma.vmem_to_hbm [thread:$0]  %s473, 1024, %s475, [#allocation4], 256, 256, 16
    $region21: #{tpu_custom_call.1} parent=1 // pred_fallthru
      _
    // Predicated region
    $region22: #{tpu_custom_call.1} parent=1 // pred_check
      _
    $region23: #{tpu_custom_call.1} parent=1 // pred_check_branch
      %482 = sbr.rel (0) target = $region25
    $region24: #{tpu_custom_call.1} parent=1 // pred_region
      %484 = dma.done [#allocation4], 1024
    $region25: #{tpu_custom_call.1} parent=1 // pred_fallthru
      _
    %485 = vsyncpa [#allocation3], 1
    %486 = vsyncpa [#allocation4], 1

</llo_original>
